<compile_context>
chip_gen: v5e
topology: v5e:2x2
jax: 0.10.0
libtpu: 0.0.40
codegen_flags: <defaults>
</compile_context>

<pallas_src>
import functools

import jax
import jax.numpy as jnp
from jax.experimental import pallas as pl
from jax.experimental.pallas import tpu as pltpu

HIDDEN = 144  # fixed by the module definition


def _ca_kernel(x_ref, w1_ref, b1_ref, w2_ref, b2_ref, o_ref, *, bf16_epilogue):
    # x_ref:  (Cin, TILE_P)    f32  pixel tile (channel-major, pixels on lanes)
    # w1_ref: (HIDDEN, Cin)    bf16 conv1 weight
    # b1_ref: (HIDDEN, 1)      bf16 (bf16 epilogue) or f32 conv1 bias
    # w2_ref: (Cout, HIDDEN)   bf16 conv2 weight
    # b2_ref: (Cout, 1)        f32  conv2 bias
    # o_ref:  (Cout, TILE_P)   f32  output tile (lane-dense)
    xb = x_ref[...].astype(jnp.bfloat16)  # in-kernel cast (VPU has slack vs DMA)
    h = jnp.dot(w1_ref[...], xb, preferred_element_type=jnp.float32)
    if bf16_epilogue:
        # v6e / v7x: bf16 VALU -> half the vregs for add+max, no separate cast.
        h = jnp.maximum(h.astype(jnp.bfloat16) + b1_ref[...], 0.0)
    else:
        # v5e and older: no bf16 VALU, keep the epilogue in f32.
        h = jnp.maximum(h + b1_ref[...], 0.0).astype(jnp.bfloat16)
    out = jnp.dot(w2_ref[...], h, preferred_element_type=jnp.float32)
    o_ref[...] = (out + b2_ref[...]).astype(o_ref.dtype)


def _bf16_valu_available():
    """True on chips with a bf16 VPU (v6e / v7x); False on v5e and older."""
    try:
        kind = jax.devices()[0].device_kind.lower()
    except Exception:
        return False
    for tag in ("v2", "v3", "v4", "v5"):
        if tag in kind:
            return False
    return "tpu" in kind


def ca_model_forward(x_nchw, w1, b1, w2, b2, *, tile_p_cap=8192,
                     bf16_epilogue=None):
    """x_nchw: (N, env_d*3, H, W) float32.  Returns (N, env_d, H, W) float32."""
    N, Cin, H, W = x_nchw.shape
    Cout = w2.shape[0]
    HW = H * W

    if bf16_epilogue is None:
        bf16_epilogue = _bf16_valu_available()

    # Channel-major / native NCHW: pixels are already the fastest-varying axis,
    # so only free reshapes are needed (no transposes, no x dtype round trip).
    x = x_nchw.reshape(N, Cin, HW).astype(jnp.float32)
    w1_mat = w1.reshape(HIDDEN, Cin).astype(jnp.bfloat16)
    w2_mat = w2.reshape(Cout, HIDDEN).astype(jnp.bfloat16)
    b1_col = b1.reshape(HIDDEN, 1).astype(
        jnp.bfloat16 if bf16_epilogue else jnp.float32)
    b2_col = b2.reshape(Cout, 1).astype(jnp.float32)

    # Pixel tile: the whole row when it fits the cap (legal block since it equals
    # the full dim), otherwise a 128-multiple cap.  Partial tail blocks are
    # clipped on writeback and pixels are independent -> no explicit masking.
    tile_p = HW if HW <= tile_p_cap else tile_p_cap
    # v7x has two TensorCores: make sure a single-image call still produces >=2
    # "parallel" grid steps (one extra ~0.35us step on single-TC chips, noise).
    if N == 1 and HW >= 256 and pl.cdiv(HW, tile_p) < 2:
        tile_p = max(128, ((HW // 2) // 128) * 128)
    grid = (N, pl.cdiv(HW, tile_p))

    flops = 2 * N * HW * (Cin * HIDDEN + HIDDEN * Cout)
    bytes_accessed = (x.size * 4                      # f32 x read (in-kernel cast)
                      + N * HW * Cout * 4             # f32 output write
                      + w1_mat.size * 2 + w2_mat.size * 2
                      + b1_col.size * b1_col.dtype.itemsize
                      + b2_col.size * 4)

    # Rough live-VMEM estimate (double-buffered x/out tiles, f32 hidden + bf16
    # copies, weights) with 2x headroom, clamped below every generation's
    # physical VMEM (v7x: 64 MiB physical).
    vmem_est = (2 * (Cin + Cout) * tile_p * 4
                + HIDDEN * tile_p * 6
                + Cin * tile_p * 2
                + (w1_mat.size + w2_mat.size) * 2 + (HIDDEN + Cout) * 4)
    vmem_limit = int(min(max(32 * 1024 * 1024, 2 * vmem_est), 48 * 1024 * 1024))

    kernel = functools.partial(_ca_kernel, bf16_epilogue=bf16_epilogue)

    out_flat = pl.pallas_call(
        kernel,
        out_shape=jax.ShapeDtypeStruct((N, Cout, HW), jnp.float32),
        grid_spec=pltpu.PrefetchScalarGridSpec(
            num_scalar_prefetch=0,
            grid=grid,
            in_specs=[
                pl.BlockSpec((None, Cin, tile_p), lambda n, p: (n, 0, p)),  # x
                pl.BlockSpec((HIDDEN, Cin), lambda n, p: (0, 0)),           # W1
                pl.BlockSpec((HIDDEN, 1), lambda n, p: (0, 0)),             # b1
                pl.BlockSpec((Cout, HIDDEN), lambda n, p: (0, 0)),          # W2
                pl.BlockSpec((Cout, 1), lambda n, p: (0, 0)),               # b2
            ],
            out_specs=pl.BlockSpec((None, Cout, tile_p), lambda n, p: (n, 0, p)),
        ),
        compiler_params=pltpu.CompilerParams(
            dimension_semantics=("parallel", "parallel"),
            vmem_limit_bytes=vmem_limit),
        cost_estimate=pl.CostEstimate(
            flops=flops, transcendentals=0, bytes_accessed=bytes_accessed),
    )(x, w1_mat, b1_col, w2_mat, b2_col)

    return out_flat.reshape(N, Cout, H, W)


if __name__ == "__main__":
    env_d = 4
    N, H, W = 2, 16, 16
    Cin = env_d * 3
    Cout = env_d

    key = jax.random.PRNGKey(0)
    kx, kw1, kb1, kw2, kb2 = jax.random.split(key, 5)

    x = jax.random.normal(kx, (N, Cin, H, W), dtype=jnp.float32)

    # conv1: PyTorch-style uniform init.
    bound1 = 1.0 / (Cin ** 0.5)
    w1 = jax.random.uniform(kw1, (HIDDEN, Cin, 1, 1), jnp.float32, -bound1, bound1)
    b1 = jax.random.uniform(kb1, (HIDDEN,), jnp.float32, -bound1, bound1)

    # The module zero-inits conv2, but the self-test uses RANDOM conv2 params so
    # the second matmul / bias / output path are actually exercised.
    bound2 = 1.0 / (HIDDEN ** 0.5)
    w2 = jax.random.uniform(kw2, (Cout, HIDDEN, 1, 1), jnp.float32, -bound2, bound2)
    b2 = jax.random.uniform(kb2, (Cout,), jnp.float32, -bound2, bound2)

    bf16_ep = _bf16_valu_available()
    out = ca_model_forward(x, w1, b1, w2, b2, bf16_epilogue=bf16_ep)
    jax.block_until_ready(out)
    assert out.shape == (N, Cout, H, W)

    # Pure-JAX reference mirroring the kernel's rounding (bf16 x / W1 / W2 / h,
    # f32 accumulation, epilogue dtype matching the kernel path).
    def r(a):
        return a.astype(jnp.bfloat16).astype(jnp.float32)

    pre = jnp.einsum("nchw,oc->nohw", r(x), r(w1.reshape(HIDDEN, Cin)))
    if bf16_ep:
        h_ref = r(jnp.maximum(r(pre) + r(b1)[None, :, None, None], 0.0))
    else:
        h_ref = r(jnp.maximum(pre + b1[None, :, None, None], 0.0))
    ref = (jnp.einsum("nchw,oc->nohw", h_ref, r(w2.reshape(Cout, HIDDEN)))
           + b2[None, :, None, None])
    assert jnp.allclose(out, ref, atol=1e-2, rtol=1e-2), "mismatch vs reference"

    # Also check the module's actual init (zero conv2 weight & bias) -> zeros out.
    out0 = ca_model_forward(x, w1, b1,
                            jnp.zeros((Cout, HIDDEN, 1, 1), jnp.float32),
                            jnp.zeros((Cout,), jnp.float32))
    jax.block_until_ready(out0)
    assert jnp.allclose(out0, jnp.zeros_like(out0), atol=1e-6)

    print("KERNEL_OK")
</pallas_src>

<mosaic_0001>
module attributes {stable_mosaic.version = 11 : i64} {
  func.func @_ca_kernel(%arg0: i32, %arg1: i32, %arg2: memref<1x12x256xf32, #tpu.memory_space<vmem>>, %arg3: memref<144x12xbf16, #tpu.memory_space<vmem>>, %arg4: memref<144x1xf32, #tpu.memory_space<vmem>>, %arg5: memref<4x144xbf16, #tpu.memory_space<vmem>>, %arg6: memref<4x1xf32, #tpu.memory_space<vmem>>, %arg7: memref<1x4x256xf32, #tpu.memory_space<vmem>>) attributes {dimension_semantics = [#tpu.dimension_semantics<parallel>, #tpu.dimension_semantics<parallel>], iteration_bounds = array<i64: 2, 1>, scalar_prefetch = 0 : i64, scratch_operands = 0 : i64, tpu.core_type = #tpu.core_type<tc>, window_params = [{transform_indices = @transform_0, window_bounds = array<i64: 1, 12, 256>}, {pipeline_mode = #tpu.pipeline_mode<synchronous>, transform_indices = @transform_1, window_bounds = array<i64: 144, 12>}, {pipeline_mode = #tpu.pipeline_mode<synchronous>, transform_indices = @transform_2, window_bounds = array<i64: 144, 1>}, {pipeline_mode = #tpu.pipeline_mode<synchronous>, transform_indices = @transform_3, window_bounds = array<i64: 4, 144>}, {pipeline_mode = #tpu.pipeline_mode<synchronous>, transform_indices = @transform_4, window_bounds = array<i64: 4, 1>}, {transform_indices = @transform_5, window_bounds = array<i64: 1, 4, 256>}]} {
    %c0 = arith.constant 0 : index
    %c0_0 = arith.constant 0 : index
    %c0_1 = arith.constant 0 : index
    %0 = vector.load %arg2[%c0, %c0_0, %c0_1] : memref<1x12x256xf32, #tpu.memory_space<vmem>>, vector<1x12x256xf32>
    %1 = vector.shape_cast %0 : vector<1x12x256xf32> to vector<12x256xf32>
    %2 = arith.truncf %1 : vector<12x256xf32> to vector<12x256xbf16>
    %c0_2 = arith.constant 0 : index
    %c0_3 = arith.constant 0 : index
    %3 = vector.load %arg3[%c0_2, %c0_3] : memref<144x12xbf16, #tpu.memory_space<vmem>>, vector<144x12xbf16>
    %cst = arith.constant dense<0.000000e+00> : vector<144x256xf32>
    %4 = tpu.matmul %3, %2, %cst {dimension_numbers = #tpu.dot_dimension_numbers<[1], [0], [0], [1], [0, 0, 1, 1], [], []>} : vector<144x12xbf16>, vector<12x256xbf16>, vector<144x256xf32> -> vector<144x256xf32>
    %c0_4 = arith.constant 0 : index
    %c0_5 = arith.constant 0 : index
    %5 = vector.load %arg4[%c0_4, %c0_5] : memref<144x1xf32, #tpu.memory_space<vmem>>, vector<144x1xf32>
    %6 = vector.broadcast %5 : vector<144x1xf32> to vector<144x256xf32>
    %7 = arith.addf %4, %6 : vector<144x256xf32>
    %cst_6 = arith.constant 0.000000e+00 : f32
    %8 = vector.broadcast %cst_6 : f32 to vector<144x256xf32>
    %9 = arith.maximumf %7, %8 : vector<144x256xf32>
    %10 = arith.truncf %9 : vector<144x256xf32> to vector<144x256xbf16>
    %c0_7 = arith.constant 0 : index
    %c0_8 = arith.constant 0 : index
    %11 = vector.load %arg5[%c0_7, %c0_8] : memref<4x144xbf16, #tpu.memory_space<vmem>>, vector<4x144xbf16>
    %cst_9 = arith.constant dense<0.000000e+00> : vector<4x256xf32>
    %12 = tpu.matmul %11, %10, %cst_9 {dimension_numbers = #tpu.dot_dimension_numbers<[1], [0], [0], [1], [0, 0, 1, 1], [], []>} : vector<4x144xbf16>, vector<144x256xbf16>, vector<4x256xf32> -> vector<4x256xf32>
    %c0_10 = arith.constant 0 : index
    %c0_11 = arith.constant 0 : index
    %13 = vector.load %arg6[%c0_10, %c0_11] : memref<4x1xf32, #tpu.memory_space<vmem>>, vector<4x1xf32>
    %14 = vector.broadcast %13 : vector<4x1xf32> to vector<4x256xf32>
    %15 = arith.addf %12, %14 : vector<4x256xf32>
    %c0_12 = arith.constant 0 : index
    %c0_13 = arith.constant 0 : index
    %c0_14 = arith.constant 0 : index
    %16 = vector.load %arg7[%c0_12, %c0_13, %c0_14] : memref<1x4x256xf32, #tpu.memory_space<vmem>>, vector<1x4x256xf32>
    %17 = vector.shape_cast %16 : vector<1x4x256xf32> to vector<4x256xf32>
    %18 = vector.shape_cast %15 : vector<4x256xf32> to vector<1x4x256xf32>
    tpu.vector_store %arg7[%c0_12, %c0_13, %c0_14], %18 {strides = array<i32>} : memref<1x4x256xf32, #tpu.memory_space<vmem>>, vector<1x4x256xf32>,
    return
  }
  func.func @transform_0(%arg0: i32, %arg1: i32) -> (i32, i32, i32) {
    %c0_i32 = arith.constant 0 : i32
    %c0_i32_0 = arith.constant 0 : i32
    return %arg0, %c0_i32, %arg1 : i32, i32, i32
  }
  func.func @transform_1(%arg0: i32, %arg1: i32) -> (i32, i32) {
    %c0_i32 = arith.constant 0 : i32
    %c0_i32_0 = arith.constant 0 : i32
    %c0_i32_1 = arith.constant 0 : i32
    return %c0_i32, %c0_i32_0 : i32, i32
  }
  func.func @transform_2(%arg0: i32, %arg1: i32) -> (i32, i32) {
    %c0_i32 = arith.constant 0 : i32
    %c0_i32_0 = arith.constant 0 : i32
    %c0_i32_1 = arith.constant 0 : i32
    return %c0_i32, %c0_i32_0 : i32, i32
  }
  func.func @transform_3(%arg0: i32, %arg1: i32) -> (i32, i32) {
    %c0_i32 = arith.constant 0 : i32
    %c0_i32_0 = arith.constant 0 : i32
    %c0_i32_1 = arith.constant 0 : i32
    return %c0_i32, %c0_i32_0 : i32, i32
  }
  func.func @transform_4(%arg0: i32, %arg1: i32) -> (i32, i32) {
    %c0_i32 = arith.constant 0 : i32
    %c0_i32_0 = arith.constant 0 : i32
    %c0_i32_1 = arith.constant 0 : i32
    return %c0_i32, %c0_i32_0 : i32, i32
  }
  func.func @transform_5(%arg0: i32, %arg1: i32) -> (i32, i32, i32) {
    %c0_i32 = arith.constant 0 : i32
    %c0_i32_0 = arith.constant 0 : i32
    return %arg0, %c0_i32, %arg1 : i32, i32, i32
  }
}

</mosaic_0001>

<llo_original>
// kernel: tpu_custom_call.1
$region0: #{tpu_custom_call.1}
  #allocation0 [shape = 'u32[]', space=smem, size = 0x4, offset = 0x4, fixed_abs, tag = 'smem constant byte address 0x4 - core index']
  #allocation1 [shape = 'u32[72,128]{1,0:T(1,128)}', space=vmem, size = 0x9000, scoped, tag = 'internal scratch']
  %s0 = inlined_call_operand.vmem [shape: f32[2,12,256], index: 0, kind: input, shape index: {}]
  %s1 = inlined_call_operand.vmem [shape: bf16[144,12], index: 1, kind: input, shape index: {}]
  %s2 = inlined_call_operand.vmem [shape: f32[144,1], index: 2, kind: input, shape index: {}]
  %s3 = inlined_call_operand.vmem [shape: bf16[4,144], index: 3, kind: input, shape index: {}]
  %s4 = inlined_call_operand.vmem [shape: f32[4,1], index: 4, kind: input, shape index: {}]
  %s5 = inlined_call_operand.hbm [shape: f32[2,4,256], index: 5, kind: output, shape index: {}]
  %s6 = sld [smem:[#allocation0]]
  $region53: #{tpu_custom_call.1} parent=0
    _
  %s8 = ssub.s32 1, %s6
  %s9 = scalar_select 0, %s8, %s6
  $region1: #{tpu_custom_call.1} parent=0
    #allocation2 [shape = 'u8[8192]{0}', space=vmem, size = 0x2000, scoped, tag = 'output window, operand 0']
    #allocation3 [shape = 's32[2]{0}', space=sflag, size = 0x8, scoped, tag = 'scoped memory for tpu_custom_call.1']
    %10 = vsyncpa [#allocation3], 0
    %s11 = scalar_lea.sflag [#allocation3], 1
    %12 = vsyncpa %s11, 0
    loop: start=0, step=1, limit=4
    $region2: #{tpu_custom_call.1} parent=1 // loop_pre_header
      _
    $region3: #{tpu_custom_call.1} parent=1 // loop_header
      %s14 = sphi 0, %s18
      %p15 = scmp.ge.s32.totalorder %s14, 4
      %s21 = sphi 0, %s33
      %s22 = sphi 0, %s29
      %s23 = sphi 0, %s21
      %s24 = sphi 0, %s22
      %s25 = sphi 0, %s23
      %s26 = sphi 0, %s24
      %s38 = sphi 0, %s40
      %s41 = sphi 0, %s38
      %s42 = sphi 0, %s41
      %s58 = sphi 0, %s42
      %s62 = sphi 0, %s62
      %s64 = sphi 0, %s62
      %s65 = sphi 0, %s64
      %s79 = sphi 0, %s65
      %s83 = sphi 0, %s83
      %s85 = sphi 0, %s83
      %s86 = sphi 0, %s85
      %s100 = sphi 0, %s86
      %s104 = sphi 0, %s104
      %s106 = sphi 0, %s104
      %s107 = sphi 0, %s106
      %s121 = sphi 0, %s107
      %s125 = sphi 0, %s125
      %s127 = sphi 0, %s125
      %s128 = sphi 0, %s127
      %s142 = sphi 0, %s128
      %s150 = sphi 0, %s152
      %s153 = sphi 0, %s150
      %s154 = sphi 0, %s153
      %s170 = sphi 0, %s154
    $region4: #{tpu_custom_call.1} parent=1 // loop_header_branch
      %17 = sbr.rel (%p15) target = $region8
    $region5: #{tpu_custom_call.1} parent=1 // loop_body
      %s19 = ssub.s32 %s14, 1
      %s20 = ssub.s32 %s14, 2
      %s27 = sadd.s32 1, %s22
      %p28 = scmp.ge.s32.totalorder %s27, 1
      %s29 = scalar_select %p28, 0, %s27
      %s30 = sadd.s32 1, %s21
      %s31 = scalar_select %p28, %s30, %s21
      %p32 = scmp.ge.s32.totalorder %s31, 2
      %s33 = scalar_select %p32, 0, %s31
      %s34 = ssub.s32 %s21, %s33
      %s35 = ssub.s32 %s22, %s29
      %s36 = sor.u32 %s34, %s35
      %p37 = scmp.eq.s32.totalorder %s36, 0
      %s39 = sadd.s32 %s38, 1
      %s40 = scalar_select %p37, %s38, %s39
      %p43 = pneg %p37
      %p44 = scmp.eq.s32.totalorder %s14, 1
      %p45 = por %p43, %p44
      %p46 = scmp.ne.s32.totalorder %s38, %s41
      %p47 = scmp.eq.s32.totalorder %s14, 0
      %p48 = por %p46, %p47
      %p49 = scmp.ne.s32.totalorder %s38, %s41
      %p50 = scmp.eq.s32.totalorder %s19, 1
      %p51 = por %p49, %p50
      %p52 = scmp.ne.s32.totalorder %s41, %s42
      %p53 = scmp.eq.s32.totalorder %s19, 0
      %p54 = por %p52, %p53
      %p55 = scmp.ne.s32.totalorder %s41, %s42
      %p56 = scmp.eq.s32.totalorder %s20, 1
      %p57 = por %p55, %p56
      %p59 = scmp.ne.s32.totalorder %s42, %s58
      %p60 = scmp.eq.s32.totalorder %s20, 0
      %p61 = por %p59, %p60
      %s63 = sadd.s32 %s62, 1
      %p66 = scmp.eq.s32.totalorder %s14, 1
      %p67 = scmp.ne.s32.totalorder %s62, %s64
      %p68 = scmp.eq.s32.totalorder %s14, 0
      %p69 = por %p67, %p68
      %p70 = scmp.ne.s32.totalorder %s62, %s64
      %p71 = scmp.eq.s32.totalorder %s19, 1
      %p72 = por %p70, %p71
      %p73 = scmp.ne.s32.totalorder %s64, %s65
      %p74 = scmp.eq.s32.totalorder %s19, 0
      %p75 = por %p73, %p74
      %p76 = scmp.ne.s32.totalorder %s64, %s65
      %p77 = scmp.eq.s32.totalorder %s20, 1
      %p78 = por %p76, %p77
      %p80 = scmp.ne.s32.totalorder %s65, %s79
      %p81 = scmp.eq.s32.totalorder %s20, 0
      %p82 = por %p80, %p81
      %s84 = sadd.s32 %s83, 1
      %p87 = scmp.eq.s32.totalorder %s14, 1
      %p88 = scmp.ne.s32.totalorder %s83, %s85
      %p89 = scmp.eq.s32.totalorder %s14, 0
      %p90 = por %p88, %p89
      %p91 = scmp.ne.s32.totalorder %s83, %s85
      %p92 = scmp.eq.s32.totalorder %s19, 1
      %p93 = por %p91, %p92
      %p94 = scmp.ne.s32.totalorder %s85, %s86
      %p95 = scmp.eq.s32.totalorder %s19, 0
      %p96 = por %p94, %p95
      %p97 = scmp.ne.s32.totalorder %s85, %s86
      %p98 = scmp.eq.s32.totalorder %s20, 1
      %p99 = por %p97, %p98
      %p101 = scmp.ne.s32.totalorder %s86, %s100
      %p102 = scmp.eq.s32.totalorder %s20, 0
      %p103 = por %p101, %p102
      %s105 = sadd.s32 %s104, 1
      %p108 = scmp.eq.s32.totalorder %s14, 1
      %p109 = scmp.ne.s32.totalorder %s104, %s106
      %p110 = scmp.eq.s32.totalorder %s14, 0
      %p111 = por %p109, %p110
      %p112 = scmp.ne.s32.totalorder %s104, %s106
      %p113 = scmp.eq.s32.totalorder %s19, 1
      %p114 = por %p112, %p113
      %p115 = scmp.ne.s32.totalorder %s106, %s107
      %p116 = scmp.eq.s32.totalorder %s19, 0
      %p117 = por %p115, %p116
      %p118 = scmp.ne.s32.totalorder %s106, %s107
      %p119 = scmp.eq.s32.totalorder %s20, 1
      %p120 = por %p118, %p119
      %p122 = scmp.ne.s32.totalorder %s107, %s121
      %p123 = scmp.eq.s32.totalorder %s20, 0
      %p124 = por %p122, %p123
      %s126 = sadd.s32 %s125, 1
      %p129 = scmp.eq.s32.totalorder %s14, 1
      %p130 = scmp.ne.s32.totalorder %s125, %s127
      %p131 = scmp.eq.s32.totalorder %s14, 0
      %p132 = por %p130, %p131
      %p133 = scmp.ne.s32.totalorder %s125, %s127
      %p134 = scmp.eq.s32.totalorder %s19, 1
      %p135 = por %p133, %p134
      %p136 = scmp.ne.s32.totalorder %s127, %s128
      %p137 = scmp.eq.s32.totalorder %s19, 0
      %p138 = por %p136, %p137
      %p139 = scmp.ne.s32.totalorder %s127, %s128
      %p140 = scmp.eq.s32.totalorder %s20, 1
      %p141 = por %p139, %p140
      %p143 = scmp.ne.s32.totalorder %s128, %s142
      %p144 = scmp.eq.s32.totalorder %s20, 0
      %p145 = por %p143, %p144
      %s146 = ssub.s32 %s21, %s33
      %s147 = ssub.s32 %s22, %s29
      %s148 = sor.u32 %s146, %s147
      %p149 = scmp.eq.s32.totalorder %s148, 0
      %s151 = sadd.s32 %s150, 1
      %s152 = scalar_select %p149, %s150, %s151
      %p155 = pneg %p149
      %p156 = scmp.eq.s32.totalorder %s14, 1
      %p157 = por %p155, %p156
      %p158 = scmp.ne.s32.totalorder %s150, %s153
      %p159 = scmp.eq.s32.totalorder %s14, 0
      %p160 = por %p158, %p159
      %p161 = scmp.ne.s32.totalorder %s150, %s153
      %p162 = scmp.eq.s32.totalorder %s19, 1
      %p163 = por %p161, %p162
      %p164 = scmp.ne.s32.totalorder %s153, %s154
      %p165 = scmp.eq.s32.totalorder %s19, 0
      %p166 = por %p164, %p165
      %p167 = scmp.ne.s32.totalorder %s153, %s154
      %p168 = scmp.eq.s32.totalorder %s20, 1
      %p169 = por %p167, %p168
      %p171 = scmp.ne.s32.totalorder %s154, %s170
      %p172 = scmp.eq.s32.totalorder %s20, 0
      %p173 = por %p171, %p172
      %p174 = scmp.le.s32.totalorder 1, %s14
      %p175 = scmp.lt.s32.totalorder %s14, 3
      %p176 = pnand %p174, %p175
      %p177 = pneg %p176
      // Predicated region
      $region9: #{tpu_custom_call.1} parent=5 // pred_check
        _
      $region10: #{tpu_custom_call.1} parent=5 // pred_check_branch
        %179 = sbr.rel (%p176) target = $region12
      $region11: #{tpu_custom_call.1} parent=5 // pred_region
        %s180 = ssub.s32 %s14, 1
        // Predicated region
        $region13: #{tpu_custom_call.1} parent=11 // pred_check
          %p181 = pneg %p75
        $region14: #{tpu_custom_call.1} parent=11 // pred_check_branch
          %183 = sbr.rel (%p181) target = $region16
        $region15: #{tpu_custom_call.1} parent=11 // pred_region
          _
        $region16: #{tpu_custom_call.1} parent=11 // pred_fallthru
          _
        // Predicated region
        $region17: #{tpu_custom_call.1} parent=11 // pred_check
          %p184 = pneg %p96
        $region18: #{tpu_custom_call.1} parent=11 // pred_check_branch
          %186 = sbr.rel (%p184) target = $region20
        $region19: #{tpu_custom_call.1} parent=11 // pred_region
          _
        $region20: #{tpu_custom_call.1} parent=11 // pred_fallthru
          _
        // Predicated region
        $region21: #{tpu_custom_call.1} parent=11 // pred_check
          %p187 = pneg %p117
        $region22: #{tpu_custom_call.1} parent=11 // pred_check_branch
          %189 = sbr.rel (%p187) target = $region24
        $region23: #{tpu_custom_call.1} parent=11 // pred_region
          _
        $region24: #{tpu_custom_call.1} parent=11 // pred_fallthru
          _
        // Predicated region
        $region25: #{tpu_custom_call.1} parent=11 // pred_check
          %p190 = pneg %p138
        $region26: #{tpu_custom_call.1} parent=11 // pred_check_branch
          %192 = sbr.rel (%p190) target = $region28
        $region27: #{tpu_custom_call.1} parent=11 // pred_region
          _
        $region28: #{tpu_custom_call.1} parent=11 // pred_fallthru
          _
      $region12: #{tpu_custom_call.1} parent=5 // pred_fallthru
        _
      %p193 = scmp.lt.s32.totalorder %s14, 2
      // Predicated region
      $region29: #{tpu_custom_call.1} parent=5 // pred_check
        %p194 = pneg %p193
      $region30: #{tpu_custom_call.1} parent=5 // pred_check_branch
        %196 = sbr.rel (%p194) target = $region32
      $region31: #{tpu_custom_call.1} parent=5 // pred_region
        // Predicated region
        $region33: #{tpu_custom_call.1} parent=31 // pred_check
          %p197 = pneg %p48
        $region34: #{tpu_custom_call.1} parent=31 // pred_check_branch
          %199 = sbr.rel (%p197) target = $region36
        $region35: #{tpu_custom_call.1} parent=31 // pred_region
          %s200 = smul.u32 2, %s22
          %p201 = scmp.lt.s32.totalorder %s21, 1
          %s202 = scalar_select %p201, %s21, 1
          %p203 = scmp.lt.s32.totalorder %s200, 1
          %s204 = scalar_select %p203, %s200, 1
          %s205 = smul.addr %s202, 4
          %s206 = sadd.s32 %s204, %s205
          %s207 = smul.addr %s206, 8
          %s208 = scalar_lea.vmem %s0, %s207
          %s209 = smul.u32 2, %s22
        $region36: #{tpu_custom_call.1} parent=31 // pred_fallthru
          _
      $region32: #{tpu_custom_call.1} parent=5 // pred_fallthru
        _
      %p210 = scmp.le.s32.totalorder 1, %s14
      %p211 = scmp.lt.s32.totalorder %s14, 3
      %p212 = pnand %p210, %p211
      %p213 = pneg %p212
      // Predicated region
      $region37: #{tpu_custom_call.1} parent=5 // pred_check
        _
      $region38: #{tpu_custom_call.1} parent=5 // pred_check_branch
        %215 = sbr.rel (%p212) target = $region40
      $region39: #{tpu_custom_call.1} parent=5 // pred_region
        %s216 = ssub.s32 %s14, 1
        %s217 = smul.u32 2, %s24
        %p218 = scmp.lt.s32.totalorder %s23, 1
        %s219 = scalar_select %p218, %s23, 1
        %p220 = scmp.lt.s32.totalorder %s217, 1
        %s221 = scalar_select %p220, %s217, 1
        %s222 = smul.addr %s219, 4
        %s223 = sadd.s32 %s221, %s222
        %s224 = smul.addr %s223, 8
        %s225 = scalar_lea.vmem %s0, %s224
        %p226 = pneg %p54
        %p227 = pneg %p51
        %p228 = pneg %p75
        %p229 = pneg %p72
        %p230 = pneg %p96
        %p231 = pneg %p93
        %p232 = pneg %p117
        %p233 = pneg %p114
        %p234 = pneg %p138
        %p235 = pneg %p135
        %p236 = pneg %p166
        %p237 = pneg %p163
        %s238 = sand.u32 %s153, 1
        %s239 = scalar_lea.sflag [#allocation3], %s238
        %s240 = sand.u32 %s153, 1
        %s241 = smul.addr %s240, 8
        %s242 = scalar_lea.vmem [#allocation2], %s241
        %s243 = smul.u32 2, %s24
        %p244 = scmp.lt.s32.totalorder %s23, 1
        %s245 = scalar_select %p244, %s23, 1
        %p246 = scmp.lt.s32.totalorder %s243, 1
        %s247 = scalar_select %p246, %s243, 1
        %s248 = smul.addr %s245, 4
        %s249 = sadd.s32 %s247, %s248
        %s250 = smul.addr %s249, 8
        %s251 = scalar_lea.vmem %s0, %s250
        %s252 = smul.u32 2, %s24
        %s253 = smul.u32 2, %s24
        %v255 = vld [vmem:[%s251] sm:$0xff]
        %v256 = vld [vmem:[%s251 + $0x8] sm:$0xff]
        %v257 = vld [vmem:[%s251 + $0x10] sm:$0xf]
        %v258 = vld [vmem:[%s251 + $0x18] sm:$0xf]
        %v259 = vpack.c.bf16 %v257, %v255
        %v260 = vpack.c.bf16 %v258, %v256
        %v261 = vld [vmem:[%s1] sm:$0xf]
        %v262 = vld [vmem:[%s1 + $0x4] sm:$0xf]
        %v263 = vld [vmem:[%s1 + $0x8] sm:$0xf]
        %v264 = vld [vmem:[%s1 + $0xc] sm:$0xf]
        %v265 = vld [vmem:[%s1 + $0x10] sm:$0xf]
        %v266 = vld [vmem:[%s1 + $0x14] sm:$0xf]
        %v267 = vld [vmem:[%s1 + $0x18] sm:$0xf]
        %v268 = vld [vmem:[%s1 + $0x1c] sm:$0xf]
        %v269 = vld [vmem:[%s1 + $0x20] sm:$0xf]
        %v270 = vld [vmem:[%s1 + $0x24] sm:$0xf]
        %v271 = vld [vmem:[%s1 + $0x28] sm:$0xf]
        %v272 = vld [vmem:[%s1 + $0x2c] sm:$0xf]
        %v273 = vld [vmem:[%s1 + $0x30] sm:$0xf]
        %v274 = vld [vmem:[%s1 + $0x34] sm:$0xf]
        %v275 = vld [vmem:[%s1 + $0x38] sm:$0xf]
        %v276 = vld [vmem:[%s1 + $0x3c] sm:$0xf]
        %v277 = vld [vmem:[%s1 + $0x40] sm:$0xf]
        %v278 = vld [vmem:[%s1 + $0x44] sm:$0xf]
        %v279 = vld [vmem:[%s2] sm:$0xff]
        %v280 = vld [vmem:[%s2 + $0x8] sm:$0xff]
        %v281 = vld [vmem:[%s2 + $0x10] sm:$0xff]
        %v282 = vld [vmem:[%s2 + $0x18] sm:$0xff]
        %v283 = vld [vmem:[%s2 + $0x20] sm:$0xff]
        %v284 = vld [vmem:[%s2 + $0x28] sm:$0xff]
        %v285 = vld [vmem:[%s2 + $0x30] sm:$0xff]
        %v286 = vld [vmem:[%s2 + $0x38] sm:$0xff]
        %v287 = vld [vmem:[%s2 + $0x40] sm:$0xff]
        %v288 = vld [vmem:[%s2 + $0x48] sm:$0xff]
        %v289 = vld [vmem:[%s2 + $0x50] sm:$0xff]
        %v290 = vld [vmem:[%s2 + $0x58] sm:$0xff]
        %v291 = vld [vmem:[%s2 + $0x60] sm:$0xff]
        %v292 = vld [vmem:[%s2 + $0x68] sm:$0xff]
        %v293 = vld [vmem:[%s2 + $0x70] sm:$0xff]
        %v294 = vld [vmem:[%s2 + $0x78] sm:$0xff]
        %v295 = vld [vmem:[%s2 + $0x80] sm:$0xff]
        %v296 = vld [vmem:[%s2 + $0x88] sm:$0xff]
        %298 = vset.pattern.permute.xlu0 0
        %299 = vperm.xlu0 %298, %v279
        %v300 = vpop.permute.xlu0 %299
        %303 = vset.pattern.permute.xlu0 0
        %304 = vperm.xlu0 %303, %v280
        %v305 = vpop.permute.xlu0 %304
        %308 = vset.pattern.permute.xlu0 0
        %309 = vperm.xlu0 %308, %v281
        %v310 = vpop.permute.xlu0 %309
        %313 = vset.pattern.permute.xlu0 0
        %314 = vperm.xlu0 %313, %v282
        %v315 = vpop.permute.xlu0 %314
        %318 = vset.pattern.permute.xlu0 0
        %319 = vperm.xlu0 %318, %v283
        %v320 = vpop.permute.xlu0 %319
        %323 = vset.pattern.permute.xlu0 0
        %324 = vperm.xlu0 %323, %v284
        %v325 = vpop.permute.xlu0 %324
        %328 = vset.pattern.permute.xlu0 0
        %329 = vperm.xlu0 %328, %v285
        %v330 = vpop.permute.xlu0 %329
        %333 = vset.pattern.permute.xlu0 0
        %334 = vperm.xlu0 %333, %v286
        %v335 = vpop.permute.xlu0 %334
        %338 = vset.pattern.permute.xlu0 0
        %339 = vperm.xlu0 %338, %v287
        %v340 = vpop.permute.xlu0 %339
        %343 = vset.pattern.permute.xlu0 0
        %344 = vperm.xlu0 %343, %v288
        %v345 = vpop.permute.xlu0 %344
        %348 = vset.pattern.permute.xlu0 0
        %349 = vperm.xlu0 %348, %v289
        %v350 = vpop.permute.xlu0 %349
        %353 = vset.pattern.permute.xlu0 0
        %354 = vperm.xlu0 %353, %v290
        %v355 = vpop.permute.xlu0 %354
        %358 = vset.pattern.permute.xlu0 0
        %359 = vperm.xlu0 %358, %v291
        %v360 = vpop.permute.xlu0 %359
        %363 = vset.pattern.permute.xlu0 0
        %364 = vperm.xlu0 %363, %v292
        %v365 = vpop.permute.xlu0 %364
        %368 = vset.pattern.permute.xlu0 0
        %369 = vperm.xlu0 %368, %v293
        %v370 = vpop.permute.xlu0 %369
        %373 = vset.pattern.permute.xlu0 0
        %374 = vperm.xlu0 %373, %v294
        %v375 = vpop.permute.xlu0 %374
        %378 = vset.pattern.permute.xlu0 0
        %379 = vperm.xlu0 %378, %v295
        %v380 = vpop.permute.xlu0 %379
        %383 = vset.pattern.permute.xlu0 0
        %384 = vperm.xlu0 %383, %v296
        %v385 = vpop.permute.xlu0 %384
        %v405 = vunpack.c.l.b16 %v261
        %v406 = vunpack.c.l.b16 %v262
        %v407 = vunpack.c.l.b16 %v263
        %v408 = vunpack.c.l.b16 %v264
        %v409 = vunpack.c.l.b16 %v265
        %v410 = vunpack.c.l.b16 %v266
        %v411 = vunpack.c.l.b16 %v267
        %v412 = vunpack.c.l.b16 %v268
        %v413 = vunpack.c.l.b16 %v269
        %v414 = vunpack.c.l.b16 %v270
        %v415 = vunpack.c.l.b16 %v271
        %v416 = vunpack.c.l.b16 %v272
        %v417 = vunpack.c.l.b16 %v273
        %v418 = vunpack.c.l.b16 %v274
        %v419 = vunpack.c.l.b16 %v275
        %v420 = vunpack.c.l.b16 %v276
        %v421 = vunpack.c.l.b16 %v277
        %v422 = vunpack.c.l.b16 %v278
        %v423 = vpack.c.b16 %v406, %v405
        %v424 = vpack.c.b16 %v408, %v407
        %v425 = vpack.c.b16 %v410, %v409
        %v426 = vpack.c.b16 %v412, %v411
        %v427 = vpack.c.b16 %v414, %v413
        %v428 = vpack.c.b16 %v416, %v415
        %v429 = vpack.c.b16 %v418, %v417
        %v430 = vpack.c.b16 %v420, %v419
        %v431 = vpack.c.b16 %v422, %v421
        %vm432 = vcmask 97280
        %v434 = vsel %vm432, %v423, 0
        %v437 = vsel %vm432, %v424, 0
        %v440 = vsel %vm432, %v425, 0
        %v443 = vsel %vm432, %v426, 0
        %v446 = vsel %vm432, %v427, 0
        %v449 = vsel %vm432, %v428, 0
        %v452 = vsel %vm432, %v429, 0
        %v455 = vsel %vm432, %v430, 0
        %v458 = vsel %vm432, %v431, 0
        %vm460 = vcmask 1045504
        %v462 = vsel %vm460, %v259, 0
        %v465 = vsel %vm460, %v260, 0
        %467 = vmatpush.bf16.msra.mxu0 0
        %468 = vmatpush.bf16.msra.mxu0 0
        %469 = vmatpush.bf16.msra.mxu0 0
        %470 = vmatpush.bf16.msra.mxu0 0
        %471 = vmatpush.bf16.msra.mxu0 0
        %472 = vmatpush.bf16.msra.mxu0 0
        %473 = vmatpush.bf16.msra.mxu0 0
        %474 = vmatpush.bf16.msra.mxu0 %v462
        %475 = vmatmul.bf16.gmra.mxu0 %v434
        %v476 = vpop.f32.mrf.mxu0
        %v477 = vadd.f32 %v300, %v476
        %v478 = vpop.f32.mrf.mxu0
        %v479 = vadd.f32 %v305, %v478
        %480 = vmatmul.bf16.gmra.mxu0 %v437
        %v481 = vpop.f32.mrf.mxu0
        %v482 = vadd.f32 %v310, %v481
        %v483 = vpop.f32.mrf.mxu0
        %v484 = vadd.f32 %v315, %v483
        %485 = vmatmul.bf16.gmra.mxu0 %v440
        %v486 = vpop.f32.mrf.mxu0
        %v487 = vadd.f32 %v320, %v486
        %v488 = vpop.f32.mrf.mxu0
        %v489 = vadd.f32 %v325, %v488
        %490 = vmatmul.bf16.gmra.mxu0 %v443
        %v491 = vpop.f32.mrf.mxu0
        %v492 = vadd.f32 %v330, %v491
        %v493 = vpop.f32.mrf.mxu0
        %v494 = vadd.f32 %v335, %v493
        %495 = vmatmul.bf16.gmra.mxu0 %v446
        %v496 = vpop.f32.mrf.mxu0
        %v497 = vadd.f32 %v340, %v496
        %v498 = vpop.f32.mrf.mxu0
        %v499 = vadd.f32 %v345, %v498
        %500 = vmatmul.bf16.gmra.mxu0 %v449
        %v501 = vpop.f32.mrf.mxu0
        %v502 = vadd.f32 %v350, %v501
        %v503 = vpop.f32.mrf.mxu0
        %v504 = vadd.f32 %v355, %v503
        %505 = vmatmul.bf16.gmra.mxu0 %v452
        %v506 = vpop.f32.mrf.mxu0
        %v507 = vadd.f32 %v360, %v506
        %v508 = vpop.f32.mrf.mxu0
        %v509 = vadd.f32 %v365, %v508
        %510 = vmatmul.bf16.gmra.mxu0 %v455
        %v511 = vpop.f32.mrf.mxu0
        %v512 = vadd.f32 %v370, %v511
        %v513 = vpop.f32.mrf.mxu0
        %v514 = vadd.f32 %v375, %v513
        %515 = vmatmul.bf16.gmra.mxu0 %v458
        %v516 = vpop.f32.mrf.mxu0
        %v517 = vadd.f32 %v380, %v516
        %v518 = vpop.f32.mrf.mxu0
        %v519 = vadd.f32 %v385, %v518
        %520 = vdwg.mxu0
        %521 = vmatpush.bf16.msra.mxu0 0
        %522 = vmatpush.bf16.msra.mxu0 0
        %523 = vmatpush.bf16.msra.mxu0 0
        %524 = vmatpush.bf16.msra.mxu0 0
        %525 = vmatpush.bf16.msra.mxu0 0
        %526 = vmatpush.bf16.msra.mxu0 0
        %527 = vmatpush.bf16.msra.mxu0 0
        %528 = vmatpush.bf16.msra.mxu0 %v465
        %529 = vmatmul.bf16.gmra.mxu0 %v434
        %v530 = vpop.f32.mrf.mxu0
        %v531 = vadd.f32 %v300, %v530
        %v532 = vpop.f32.mrf.mxu0
        %v533 = vadd.f32 %v305, %v532
        %534 = vmatmul.bf16.gmra.mxu0 %v437
        %v535 = vpop.f32.mrf.mxu0
        %v536 = vadd.f32 %v310, %v535
        %v537 = vpop.f32.mrf.mxu0
        %v538 = vadd.f32 %v315, %v537
        %539 = vmatmul.bf16.gmra.mxu0 %v440
        %v540 = vpop.f32.mrf.mxu0
        %v541 = vadd.f32 %v320, %v540
        %v542 = vpop.f32.mrf.mxu0
        %v543 = vadd.f32 %v325, %v542
        %544 = vmatmul.bf16.gmra.mxu0 %v443
        %v545 = vpop.f32.mrf.mxu0
        %v546 = vadd.f32 %v330, %v545
        %v547 = vpop.f32.mrf.mxu0
        %v548 = vadd.f32 %v335, %v547
        %549 = vmatmul.bf16.gmra.mxu0 %v446
        %v550 = vpop.f32.mrf.mxu0
        %v551 = vadd.f32 %v340, %v550
        %v552 = vpop.f32.mrf.mxu0
        %v553 = vadd.f32 %v345, %v552
        %554 = vmatmul.bf16.gmra.mxu0 %v449
        %v555 = vpop.f32.mrf.mxu0
        %v556 = vadd.f32 %v350, %v555
        %v557 = vpop.f32.mrf.mxu0
        %v558 = vadd.f32 %v355, %v557
        %559 = vmatmul.bf16.gmra.mxu0 %v452
        %v560 = vpop.f32.mrf.mxu0
        %v561 = vadd.f32 %v360, %v560
        %v562 = vpop.f32.mrf.mxu0
        %v563 = vadd.f32 %v365, %v562
        %564 = vmatmul.bf16.gmra.mxu0 %v455
        %v565 = vpop.f32.mrf.mxu0
        %v566 = vadd.f32 %v370, %v565
        %v567 = vpop.f32.mrf.mxu0
        %v568 = vadd.f32 %v375, %v567
        %569 = vmatmul.bf16.gmra.mxu0 %v458
        %v570 = vpop.f32.mrf.mxu0
        %v571 = vadd.f32 %v380, %v570
        %v572 = vpop.f32.mrf.mxu0
        %v573 = vadd.f32 %v385, %v572
        %574 = vdwg.mxu0
        %v575 = vmax.f32 %v477, 0.0
        %v576 = vmax.f32 %v531, 0.0
        %v577 = vmax.f32 %v479, 0.0
        %v578 = vmax.f32 %v533, 0.0
        %v579 = vmax.f32 %v482, 0.0
        %v580 = vmax.f32 %v536, 0.0
        %v581 = vmax.f32 %v484, 0.0
        %v582 = vmax.f32 %v538, 0.0
        %v583 = vmax.f32 %v487, 0.0
        %v584 = vmax.f32 %v541, 0.0
        %v585 = vmax.f32 %v489, 0.0
        %v586 = vmax.f32 %v543, 0.0
        %v587 = vmax.f32 %v492, 0.0
        %v588 = vmax.f32 %v546, 0.0
        %v589 = vmax.f32 %v494, 0.0
        %v590 = vmax.f32 %v548, 0.0
        %v591 = vmax.f32 %v497, 0.0
        %v592 = vmax.f32 %v551, 0.0
        %v593 = vmax.f32 %v499, 0.0
        %v594 = vmax.f32 %v553, 0.0
        %v595 = vmax.f32 %v502, 0.0
        %v596 = vmax.f32 %v556, 0.0
        %v597 = vmax.f32 %v504, 0.0
        %v598 = vmax.f32 %v558, 0.0
        %v599 = vmax.f32 %v507, 0.0
        %v600 = vmax.f32 %v561, 0.0
        %v601 = vmax.f32 %v509, 0.0
        %v602 = vmax.f32 %v563, 0.0
        %v603 = vmax.f32 %v512, 0.0
        %v604 = vmax.f32 %v566, 0.0
        %v605 = vmax.f32 %v514, 0.0
        %v606 = vmax.f32 %v568, 0.0
        %v607 = vmax.f32 %v517, 0.0
        %v608 = vmax.f32 %v571, 0.0
        %v609 = vmax.f32 %v519, 0.0
        %v610 = vmax.f32 %v573, 0.0
        %v611 = vpack.c.bf16 %v577, %v575
        %v612 = vpack.c.bf16 %v578, %v576
        %v613 = vpack.c.bf16 %v581, %v579
        %v614 = vpack.c.bf16 %v582, %v580
        %v615 = vpack.c.bf16 %v585, %v583
        %v616 = vpack.c.bf16 %v586, %v584
        %v617 = vpack.c.bf16 %v589, %v587
        %v618 = vpack.c.bf16 %v590, %v588
        %v619 = vpack.c.bf16 %v593, %v591
        %v620 = vpack.c.bf16 %v594, %v592
        %v621 = vpack.c.bf16 %v597, %v595
        %v622 = vpack.c.bf16 %v598, %v596
        %v623 = vpack.c.bf16 %v601, %v599
        %v624 = vpack.c.bf16 %v602, %v600
        %v625 = vpack.c.bf16 %v605, %v603
        %v626 = vpack.c.bf16 %v606, %v604
        %v627 = vpack.c.bf16 %v609, %v607
        %v628 = vpack.c.bf16 %v610, %v608
        %v629 = vld [vmem:[%s3] sm:$0xf]
        %v630 = vld [vmem:[%s4] sm:$0xf]
        %632 = vset.pattern.permute.xlu0 0
        %633 = vperm.xlu0 %632, %v630
        %v634 = vpop.permute.xlu0 %633
        %637 = vst [vmem:[#allocation1] ss:$4 sm:$0xff] %v629
        %v638 = vld.sshfl [vmem:[#allocation1] sm:$0xff pattern:$0x73625140]
        %v639 = vld.sshfl [vmem:[#allocation1 + $0x8] sm:$0xff pattern:$0x73625140]
        %vm641 = vcmask 130048
        %v642 = vsel %vm641, %v639, 0
        %644 = vmatpush.bf16.msra.mxu0 %v625
        %645 = vmatpush.bf16.msra.mxu0 %v623
        %646 = vmatpush.bf16.msra.mxu0 %v621
        %647 = vmatpush.bf16.msra.mxu0 %v619
        %648 = vmatpush.bf16.msra.mxu0 %v617
        %649 = vmatpush.bf16.msra.mxu0 %v615
        %650 = vmatpush.bf16.msra.mxu0 %v613
        %651 = vmatpush.bf16.msra.mxu0 %v611
        %652 = vmatmul.bf16.gmra.mxu0 %v638
        %v653 = vpop.f32.mrf.mxu0
        %v654 = vadd.f32 %v634, %v653
        %v655 = vpop.f32.mrf.mxu0
        %656 = vdwg.mxu0
        %657 = vmatpush.bf16.msra.mxu0 0
        %658 = vmatpush.bf16.msra.mxu0 0
        %659 = vmatpush.bf16.msra.mxu0 0
        %660 = vmatpush.bf16.msra.mxu0 0
        %661 = vmatpush.bf16.msra.mxu0 0
        %662 = vmatpush.bf16.msra.mxu0 0
        %663 = vmatpush.bf16.msra.mxu0 0
        %664 = vmatpush.bf16.msra.mxu0 %v627
        %665 = vmatmul.bf16.gmra.mxu0 %v642
        %v666 = vpop.f32.mrf.mxu0
        %v667 = vadd.f32 %v654, %v666
        %v668 = vpop.f32.mrf.mxu0
        %669 = vdwg.mxu0
        %670 = vmatpush.bf16.msra.mxu0 %v626
        %671 = vmatpush.bf16.msra.mxu0 %v624
        %672 = vmatpush.bf16.msra.mxu0 %v622
        %673 = vmatpush.bf16.msra.mxu0 %v620
        %674 = vmatpush.bf16.msra.mxu0 %v618
        %675 = vmatpush.bf16.msra.mxu0 %v616
        %676 = vmatpush.bf16.msra.mxu0 %v614
        %677 = vmatpush.bf16.msra.mxu0 %v612
        %678 = vmatmul.bf16.gmra.mxu0 %v638
        %v679 = vpop.f32.mrf.mxu0
        %v680 = vadd.f32 %v634, %v679
        %v681 = vpop.f32.mrf.mxu0
        %682 = vdwg.mxu0
        %683 = vmatpush.bf16.msra.mxu0 0
        %684 = vmatpush.bf16.msra.mxu0 0
        %685 = vmatpush.bf16.msra.mxu0 0
        %686 = vmatpush.bf16.msra.mxu0 0
        %687 = vmatpush.bf16.msra.mxu0 0
        %688 = vmatpush.bf16.msra.mxu0 0
        %689 = vmatpush.bf16.msra.mxu0 0
        %690 = vmatpush.bf16.msra.mxu0 %v628
        %691 = vmatmul.bf16.gmra.mxu0 %v642
        %v692 = vpop.f32.mrf.mxu0
        %v693 = vadd.f32 %v680, %v692
        %v694 = vpop.f32.mrf.mxu0
        %695 = vdwg.mxu0
        %v698 = vrot.slane %v693, 4
        %vm699 = vcmask 1043456
        %v700 = vsel %vm699, %v667, %v698
        %702 = vst [vmem:[%s242] sm:$0xff] %v700
        %s703 = sand.u32 %s153, 1
        %s704 = scalar_lea.sflag [#allocation3], %s703
        %s705 = sand.u32 %s153, 1
        %s706 = smul.addr %s705, 8
        %s707 = scalar_lea.vmem [#allocation2], %s706
        // Predicated region
        $region41: #{tpu_custom_call.1} parent=39 // pred_check
          %p708 = pneg %p163
        $region42: #{tpu_custom_call.1} parent=39 // pred_check_branch
          %710 = sbr.rel (%p708) target = $region44
        $region43: #{tpu_custom_call.1} parent=39 // pred_region
          %s711 = smul.u32 2, %s24
          %713 = vsyncadd %s704, 0
          %s714 = smul.addr %s23, 2
          %s715 = sadd.s32 %s711, %s714
          %s716 = smul.addr %s715, 4
          %s717 = scalar_lea.hbm %s5, %s716
          %s719 = sshll.u32 %s707, 4
          %s720 = int_to_ptr.vmem [resolvable:$true] %s719
          %s721 = sshll.u32 %s717, 4
          %s722 = int_to_ptr.hbm [resolvable:$true] %s721
          %724 = dma.vmem_to_hbm [thread:$0]  %s720, 128, %s722, %s704
        $region44: #{tpu_custom_call.1} parent=39 // pred_fallthru
          _
      $region40: #{tpu_custom_call.1} parent=5 // pred_fallthru
        _
      %p725 = scmp.le.s32.totalorder 2, %s14
      // Predicated region
      $region45: #{tpu_custom_call.1} parent=5 // pred_check
        %p726 = pneg %p725
      $region46: #{tpu_custom_call.1} parent=5 // pred_check_branch
        %728 = sbr.rel (%p726) target = $region48
      $region47: #{tpu_custom_call.1} parent=5 // pred_region
        %s729 = ssub.s32 %s14, 2
        // Predicated region
        $region49: #{tpu_custom_call.1} parent=47 // pred_check
          %p730 = pneg %p169
        $region50: #{tpu_custom_call.1} parent=47 // pred_check_branch
          %732 = sbr.rel (%p730) target = $region52
        $region51: #{tpu_custom_call.1} parent=47 // pred_region
          %s733 = sand.u32 %s154, 1
          %s734 = scalar_lea.sflag [#allocation3], %s733
          %s735 = sand.u32 %s154, 1
          %s736 = smul.addr %s735, 8
          %s737 = scalar_lea.vmem [#allocation2], %s736
          %739 = dma.done %s734, 128
        $region52: #{tpu_custom_call.1} parent=47 // pred_fallthru
          _
      $region48: #{tpu_custom_call.1} parent=5 // pred_fallthru
        _
    $region6: #{tpu_custom_call.1} parent=1 // loop_footer
      %s18 = sadd.s32 1, %s14
    $region7: #{tpu_custom_call.1} parent=1 // loop_footer_branch
      %13 = sbr.rel target = $region3
    $region8: #{tpu_custom_call.1} parent=1 // loop_exit
      _
    %740 = vsyncpa [#allocation3], 1
    %s741 = scalar_lea.sflag [#allocation3], 1
    %742 = vsyncpa %s741, 1

</llo_original>
